<compile_context>
chip_gen: v7x
topology: tpu7x:2x2x1
jax: 0.10.0
libtpu: 0.0.40
codegen_flags: <defaults>
</compile_context>

<pallas_src>
import functools

import numpy as np
import jax
import jax.numpy as jnp
from jax.experimental import pallas as pl
from jax.experimental.pallas import tpu as pltpu


# ---------------------------------------------------------------------------
# Pallas kernel
# ---------------------------------------------------------------------------
def _valid_mae_kernel(thr_ref, itv_ref, pred_ref, gt_ref, before_ref, out_ref,
                      acc_cnt_ref, acc_err_ref, *,
                      rows_total, tile_rows, need_row_mask):
    """Grid = (batch, row_chunks).  Block refs are (TR, W) slabs of one batch.

    thr_ref / itv_ref : (B,) f32 in SMEM  (thr = valid_threshold * interval)
    pred/gt/before    : (TR, W) blocks (batch dim squeezed)
    out_ref           : (1, 1)  per-batch loss contribution
    acc_cnt/acc_err   : (TR, W) f32 VMEM accumulators (deferred reduction)
    """
    b = pl.program_id(0)
    c = pl.program_id(1)

    @pl.when(c == 0)
    def _():
        acc_cnt_ref[...] = jnp.zeros_like(acc_cnt_ref)
        acc_err_ref[...] = jnp.zeros_like(acc_err_ref)

    gt = gt_ref[...].astype(jnp.float32)
    before = before_ref[...].astype(jnp.float32)
    pred = pred_ref[...].astype(jnp.float32)

    thr = thr_ref[b]  # scalar: valid_threshold * depth_interval[b]

    # mask_true * mask_valid, without any per-element divide
    mask = jnp.logical_and(gt != 0.0, jnp.abs(gt - before) < thr)
    if need_row_mask:
        # ragged last chunk: out-of-bounds rows of the block hold garbage
        row = c * tile_rows + jax.lax.broadcasted_iota(jnp.int32, gt.shape, 0)
        mask = jnp.logical_and(mask, row < rows_total)

    abs_err = jnp.abs(pred - gt)
    acc_cnt_ref[...] += mask.astype(jnp.float32)
    acc_err_ref[...] += jnp.where(mask, abs_err, 0.0)

    @pl.when(c == pl.num_programs(1) - 1)
    def _():
        denom = jnp.sum(acc_cnt_ref[...]) + 1e-7
        err_sum = jnp.sum(acc_err_ref[...])
        loss_b = err_sum / (itv_ref[b] * denom)
        out_ref[...] = jnp.full((1, 1), loss_b, dtype=out_ref.dtype)


# ---------------------------------------------------------------------------
# Glue: nearest resize (layout only), tiling, final tiny scalar sum
# ---------------------------------------------------------------------------
def _nearest_resize_nchw(x, out_h, out_w):
    """Nearest-neighbour resize matching F.interpolate(mode='nearest')."""
    _, _, h, w = x.shape
    rows = (jnp.arange(out_h) * h) // out_h
    cols = (jnp.arange(out_w) * w) // out_w
    return x[:, :, rows[:, None], cols[None, :]]


def valid_mae_loss(pred_depth, gt_depth, depth_interval, before_depth,
                   *, valid_threshold=2.0, block_bytes=2 * 1024 * 1024):
    """Pallas implementation of Valid_MAELoss.forward (returns a scalar)."""
    B, C, H, W = pred_depth.shape

    # Same condition as the PyTorch module: height mismatch triggers resize.
    # TODO(synk): fuse this nearest gather into the kernel's index_map to
    # avoid the extra HBM copy of `before` in the mismatched-resolution case.
    if before_depth.shape[2] != H:
        before_depth = _nearest_resize_nchw(before_depth, H, W)

    interval = jnp.reshape(depth_interval, (-1,)).astype(jnp.float32)   # (B,)
    thr = (valid_threshold * interval).astype(jnp.float32)              # (B,)

    CH = C * H
    pred_f = pred_depth.reshape(B, CH, W)       # free dim-merges, no copies
    gt_f = gt_depth.reshape(B, CH, W)
    before_f = before_depth.reshape(B, CH, W)

    # Row-tile sizing against the real VMEM footprint:
    #   3 inputs x 2 pipeline buffers x TR*W*esize  +  2 f32 accumulators.
    rows_cap = max(8, (block_bytes // (4 * W)) // 8 * 8)
    if CH <= rows_cap:
        TR, num_chunks = CH, 1
    else:
        TR = rows_cap
        num_chunks = pl.cdiv(CH, TR)
    need_row_mask = (CH % TR) != 0

    in_itemsize = max(pred_f.dtype.itemsize, gt_f.dtype.itemsize,
                      before_f.dtype.itemsize)
    footprint = 3 * 2 * TR * W * in_itemsize + 2 * TR * W * 4 + (1 << 20)
    vmem_limit = int(min(48 * 1024 * 1024, max(16 * 1024 * 1024, footprint)))

    kernel = functools.partial(_valid_mae_kernel, rows_total=CH,
                               tile_rows=TR, need_row_mask=need_row_mask)

    n_elems = B * CH * W
    cost = pl.CostEstimate(
        flops=10 * n_elems,
        transcendentals=0,
        bytes_accessed=int(pred_f.size * pred_f.dtype.itemsize
                           + gt_f.size * gt_f.dtype.itemsize
                           + before_f.size * before_f.dtype.itemsize
                           + 12 * B))

    per_batch = pl.pallas_call(
        kernel,
        out_shape=jax.ShapeDtypeStruct((B, 1, 1), jnp.float32),
        grid=(B, num_chunks),
        in_specs=[
            pl.BlockSpec(memory_space=pltpu.MemorySpace.SMEM),       # thr (B,)
            pl.BlockSpec(memory_space=pltpu.MemorySpace.SMEM),       # interval (B,)
            pl.BlockSpec((None, TR, W), lambda b, c: (b, c, 0)),     # pred
            pl.BlockSpec((None, TR, W), lambda b, c: (b, c, 0)),     # gt
            pl.BlockSpec((None, TR, W), lambda b, c: (b, c, 0)),     # before
        ],
        out_specs=pl.BlockSpec((None, 1, 1), lambda b, c: (b, 0, 0)),
        scratch_shapes=[pltpu.VMEM((TR, W), jnp.float32),
                        pltpu.VMEM((TR, W), jnp.float32)],
        compiler_params=pltpu.CompilerParams(
            dimension_semantics=("parallel", "arbitrary"),
            vmem_limit_bytes=vmem_limit),
        cost_estimate=cost,
    )(thr, interval, pred_f, gt_f, before_f)

    return jnp.sum(per_batch)


# ---------------------------------------------------------------------------
# Pure-JAX reference mirroring the PyTorch module
# ---------------------------------------------------------------------------
def reference_loss(pred, gt, depth_interval, before, valid_threshold=2.0):
    pred = pred.astype(jnp.float32)
    gt = gt.astype(jnp.float32)
    before = before.astype(jnp.float32)
    _, _, H, W = pred.shape
    if before.shape[2] != H:
        before = _nearest_resize_nchw(before, H, W)
    interval = jnp.reshape(depth_interval, (-1,)).astype(jnp.float32)
    mask_true = (gt != 0.0).astype(jnp.float32)
    diff = jnp.abs(gt - before) / interval.reshape(-1, 1, 1, 1)
    mask_valid = (diff < valid_threshold).astype(jnp.float32) * mask_true
    denom = jnp.sum(mask_valid, axis=(1, 2, 3)) + 1e-7
    mae = jnp.sum(mask_valid * jnp.abs(pred - gt), axis=(1, 2, 3))
    return jnp.sum(mae / interval / denom)


if __name__ == "__main__":
    key = jax.random.PRNGKey(0)
    ks = jax.random.split(key, 8)

    B, C, H, W = 2, 1, 16, 16
    gt = jax.random.uniform(ks[0], (B, C, H, W), jnp.float32, 1.0, 5.0)
    gt = jnp.where(jax.random.uniform(ks[1], (B, C, H, W)) < 0.3, 0.0, gt)
    pred = gt + 0.3 * jax.random.normal(ks[2], (B, C, H, W), jnp.float32)
    depth_interval = jax.random.uniform(ks[3], (B,), jnp.float32, 0.5, 1.0)

    loss_fn = jax.jit(functools.partial(valid_mae_loss, valid_threshold=2.0))

    # case 1: before_depth_image at full resolution (no interpolation path)
    before_same = gt + 1.5 * jax.random.normal(ks[4], (B, C, H, W), jnp.float32)
    out1 = jax.block_until_ready(loss_fn(pred, gt, depth_interval, before_same))
    ref1 = reference_loss(pred, gt, depth_interval, before_same)
    np.testing.assert_allclose(np.asarray(out1), np.asarray(ref1),
                               rtol=1e-5, atol=1e-5)

    # case 2: before_depth_image at half resolution (nearest-resize path)
    before_small = jax.random.uniform(ks[5], (B, C, H // 2, W // 2),
                                      jnp.float32, 1.0, 6.0)
    out2 = jax.block_until_ready(loss_fn(pred, gt, depth_interval, before_small))
    ref2 = reference_loss(pred, gt, depth_interval, before_small)
    np.testing.assert_allclose(np.asarray(out2), np.asarray(ref2),
                               rtol=1e-5, atol=1e-5)

    # case 3: force multi-chunk row tiling with a ragged last tile
    H3 = 20
    gt3 = jax.random.uniform(ks[6], (B, C, H3, W), jnp.float32, 1.0, 5.0)
    gt3 = jnp.where(jax.random.uniform(ks[7], (B, C, H3, W)) < 0.3, 0.0, gt3)
    pred3 = gt3 + 0.3
    before3 = gt3 + 0.9
    loss_fn_small = jax.jit(functools.partial(valid_mae_loss,
                                              valid_threshold=2.0,
                                              block_bytes=8 * W * 4))
    out3 = jax.block_until_ready(loss_fn_small(pred3, gt3, depth_interval,
                                               before3))
    ref3 = reference_loss(pred3, gt3, depth_interval, before3)
    np.testing.assert_allclose(np.asarray(out3), np.asarray(ref3),
                               rtol=1e-5, atol=1e-5)

    print("KERNEL_OK")
</pallas_src>

<mosaic_0001>
module attributes {stable_mosaic.version = 11 : i64} {
  func.func @_valid_mae_kernel(%arg0: i32, %arg1: i32, %arg2: memref<2xf32, #tpu.memory_space<smem>>, %arg3: memref<2xf32, #tpu.memory_space<smem>>, %arg4: memref<1x16x16xf32, #tpu.memory_space<vmem>>, %arg5: memref<1x16x16xf32, #tpu.memory_space<vmem>>, %arg6: memref<1x16x16xf32, #tpu.memory_space<vmem>>, %arg7: memref<1x1x1xf32, #tpu.memory_space<vmem>>, %arg8: memref<16x16xf32, #tpu.memory_space<vmem>>, %arg9: memref<16x16xf32, #tpu.memory_space<vmem>>) attributes {dimension_semantics = [#tpu.dimension_semantics<parallel>, #tpu.dimension_semantics<arbitrary>], iteration_bounds = array<i64: 2, 1>, scalar_prefetch = 0 : i64, scratch_operands = 2 : i64, tpu.core_type = #tpu.core_type<tc>, window_params = [{transform_indices = @transform_0, window_bounds = array<i64: 2>}, {transform_indices = @transform_1, window_bounds = array<i64: 2>}, {transform_indices = @transform_2, window_bounds = array<i64: 1, 16, 16>}, {transform_indices = @transform_3, window_bounds = array<i64: 1, 16, 16>}, {transform_indices = @transform_4, window_bounds = array<i64: 1, 16, 16>}, {transform_indices = @transform_5, window_bounds = array<i64: 1, 1, 1>}]} {
    %c0_i32 = arith.constant 0 : i32
    %0 = arith.cmpi eq, %arg1, %c0_i32 : i32
    %1 = arith.extui %0 : i1 to i32
    %c0_i32_0 = arith.constant 0 : i32
    %2 = arith.cmpi ne, %1, %c0_i32_0 : i32
    scf.if %2 {
      %cst_20 = arith.constant 0.000000e+00 : f32
      %33 = vector.broadcast %cst_20 : f32 to vector<16x16xf32>
      %c0_21 = arith.constant 0 : index
      %c0_22 = arith.constant 0 : index
      %34 = vector.load %arg8[%c0_21, %c0_22] : memref<16x16xf32, #tpu.memory_space<vmem>>, vector<16x16xf32>
      tpu.vector_store %arg8[%c0_21, %c0_22], %33 {strides = array<i32>} : memref<16x16xf32, #tpu.memory_space<vmem>>, vector<16x16xf32>,
      %cst_23 = arith.constant 0.000000e+00 : f32
      %35 = vector.broadcast %cst_23 : f32 to vector<16x16xf32>
      %c0_24 = arith.constant 0 : index
      %c0_25 = arith.constant 0 : index
      %36 = vector.load %arg9[%c0_24, %c0_25] : memref<16x16xf32, #tpu.memory_space<vmem>>, vector<16x16xf32>
      tpu.vector_store %arg9[%c0_24, %c0_25], %35 {strides = array<i32>} : memref<16x16xf32, #tpu.memory_space<vmem>>, vector<16x16xf32>,
    } else {
    }
    %c0 = arith.constant 0 : index
    %c0_1 = arith.constant 0 : index
    %c0_2 = arith.constant 0 : index
    %3 = vector.load %arg5[%c0, %c0_1, %c0_2] : memref<1x16x16xf32, #tpu.memory_space<vmem>>, vector<1x16x16xf32>
    %4 = vector.shape_cast %3 : vector<1x16x16xf32> to vector<16x16xf32>
    %c0_3 = arith.constant 0 : index
    %c0_4 = arith.constant 0 : index
    %c0_5 = arith.constant 0 : index
    %5 = vector.load %arg6[%c0_3, %c0_4, %c0_5] : memref<1x16x16xf32, #tpu.memory_space<vmem>>, vector<1x16x16xf32>
    %6 = vector.shape_cast %5 : vector<1x16x16xf32> to vector<16x16xf32>
    %c0_6 = arith.constant 0 : index
    %c0_7 = arith.constant 0 : index
    %c0_8 = arith.constant 0 : index
    %7 = vector.load %arg4[%c0_6, %c0_7, %c0_8] : memref<1x16x16xf32, #tpu.memory_space<vmem>>, vector<1x16x16xf32>
    %8 = vector.shape_cast %7 : vector<1x16x16xf32> to vector<16x16xf32>
    %9 = arith.index_cast %arg0 : i32 to index
    %10 = memref.load %arg2[%9] : memref<2xf32, #tpu.memory_space<smem>>
    %cst = arith.constant 0.000000e+00 : f32
    %11 = vector.broadcast %cst : f32 to vector<16x16xf32>
    %12 = arith.cmpf one, %4, %11 : vector<16x16xf32>
    %13 = arith.subf %4, %6 : vector<16x16xf32>
    %14 = math.absf %13 : vector<16x16xf32>
    %15 = vector.broadcast %10 : f32 to vector<16x16xf32>
    %16 = arith.cmpf olt, %14, %15 : vector<16x16xf32>
    %17 = arith.andi %12, %16 : vector<16x16xi1>
    %18 = arith.subf %8, %4 : vector<16x16xf32>
    %19 = math.absf %18 : vector<16x16xf32>
    %c0_9 = arith.constant 0 : index
    %c0_10 = arith.constant 0 : index
    %20 = vector.load %arg8[%c0_9, %c0_10] : memref<16x16xf32, #tpu.memory_space<vmem>>, vector<16x16xf32>
    %21 = arith.extui %17 : vector<16x16xi1> to vector<16x16xi32>
    %22 = arith.sitofp %21 : vector<16x16xi32> to vector<16x16xf32>
    %23 = arith.addf %20, %22 : vector<16x16xf32>
    %c0_11 = arith.constant 0 : index
    %c0_12 = arith.constant 0 : index
    %24 = vector.load %arg8[%c0_11, %c0_12] : memref<16x16xf32, #tpu.memory_space<vmem>>, vector<16x16xf32>
    tpu.vector_store %arg8[%c0_11, %c0_12], %23 {strides = array<i32>} : memref<16x16xf32, #tpu.memory_space<vmem>>, vector<16x16xf32>,
    %c0_13 = arith.constant 0 : index
    %c0_14 = arith.constant 0 : index
    %25 = vector.load %arg9[%c0_13, %c0_14] : memref<16x16xf32, #tpu.memory_space<vmem>>, vector<16x16xf32>
    %cst_15 = arith.constant 0.000000e+00 : f32
    %26 = vector.broadcast %cst_15 : f32 to vector<16x16xf32>
    %27 = arith.select %17, %19, %26 : vector<16x16xi1>, vector<16x16xf32>
    %28 = arith.addf %25, %27 : vector<16x16xf32>
    %c0_16 = arith.constant 0 : index
    %c0_17 = arith.constant 0 : index
    %29 = vector.load %arg9[%c0_16, %c0_17] : memref<16x16xf32, #tpu.memory_space<vmem>>, vector<16x16xf32>
    tpu.vector_store %arg9[%c0_16, %c0_17], %28 {strides = array<i32>} : memref<16x16xf32, #tpu.memory_space<vmem>>, vector<16x16xf32>,
    %c0_i32_18 = arith.constant 0 : i32
    %30 = arith.cmpi eq, %arg1, %c0_i32_18 : i32
    %31 = arith.extui %30 : i1 to i32
    %c0_i32_19 = arith.constant 0 : i32
    %32 = arith.cmpi ne, %31, %c0_i32_19 : i32
    scf.if %32 {
      %c0_20 = arith.constant 0 : index
      %c0_21 = arith.constant 0 : index
      %33 = vector.load %arg8[%c0_20, %c0_21] : memref<16x16xf32, #tpu.memory_space<vmem>>, vector<16x16xf32>
      %34 = vector.shape_cast %33 : vector<16x16xf32> to vector<1x16x16xf32>
      %cst_22 = arith.constant dense<0.000000e+00> : vector<1xf32>
      %35 = vector.multi_reduction <add>, %34, %cst_22 [1, 2] : vector<1x16x16xf32> to vector<1xf32>
      %36 = vector.shape_cast %35 : vector<1xf32> to vector<1x1x1xf32>
      %37 = vector.extract %36[0, 0, 0] : f32 from vector<1x1x1xf32>
      %cst_23 = arith.constant 1.000000e-07 : f32
      %38 = arith.addf %37, %cst_23 : f32
      %c0_24 = arith.constant 0 : index
      %c0_25 = arith.constant 0 : index
      %39 = vector.load %arg9[%c0_24, %c0_25] : memref<16x16xf32, #tpu.memory_space<vmem>>, vector<16x16xf32>
      %40 = vector.shape_cast %39 : vector<16x16xf32> to vector<1x16x16xf32>
      %cst_26 = arith.constant dense<0.000000e+00> : vector<1xf32>
      %41 = vector.multi_reduction <add>, %40, %cst_26 [1, 2] : vector<1x16x16xf32> to vector<1xf32>
      %42 = vector.shape_cast %41 : vector<1xf32> to vector<1x1x1xf32>
      %43 = vector.extract %42[0, 0, 0] : f32 from vector<1x1x1xf32>
      %44 = arith.index_cast %arg0 : i32 to index
      %45 = memref.load %arg3[%44] : memref<2xf32, #tpu.memory_space<smem>>
      %46 = arith.mulf %45, %38 : f32
      %47 = arith.divf %43, %46 : f32
      %48 = vector.broadcast %47 : f32 to vector<1x1xf32>
      %c0_27 = arith.constant 0 : index
      %c0_28 = arith.constant 0 : index
      %c0_29 = arith.constant 0 : index
      %49 = vector.load %arg7[%c0_27, %c0_28, %c0_29] : memref<1x1x1xf32, #tpu.memory_space<vmem>>, vector<1x1x1xf32>
      %50 = vector.shape_cast %49 : vector<1x1x1xf32> to vector<1x1xf32>
      %51 = vector.shape_cast %48 : vector<1x1xf32> to vector<1x1x1xf32>
      tpu.vector_store %arg7[%c0_27, %c0_28, %c0_29], %51 {strides = array<i32>} : memref<1x1x1xf32, #tpu.memory_space<vmem>>, vector<1x1x1xf32>,
    } else {
    }
    return
  }
  func.func @transform_0(%arg0: i32, %arg1: i32) -> i32 {
    %c0_i32 = arith.constant 0 : i32
    %c0_i32_0 = arith.constant 0 : i32
    return %c0_i32 : i32
  }
  func.func @transform_1(%arg0: i32, %arg1: i32) -> i32 {
    %c0_i32 = arith.constant 0 : i32
    %c0_i32_0 = arith.constant 0 : i32
    return %c0_i32 : i32
  }
  func.func @transform_2(%arg0: i32, %arg1: i32) -> (i32, i32, i32) {
    %c0_i32 = arith.constant 0 : i32
    %c0_i32_0 = arith.constant 0 : i32
    return %arg0, %arg1, %c0_i32 : i32, i32, i32
  }
  func.func @transform_3(%arg0: i32, %arg1: i32) -> (i32, i32, i32) {
    %c0_i32 = arith.constant 0 : i32
    %c0_i32_0 = arith.constant 0 : i32
    return %arg0, %arg1, %c0_i32 : i32, i32, i32
  }
  func.func @transform_4(%arg0: i32, %arg1: i32) -> (i32, i32, i32) {
    %c0_i32 = arith.constant 0 : i32
    %c0_i32_0 = arith.constant 0 : i32
    return %arg0, %arg1, %c0_i32 : i32, i32, i32
  }
  func.func @transform_5(%arg0: i32, %arg1: i32) -> (i32, i32, i32) {
    %c0_i32 = arith.constant 0 : i32
    %c0_i32_0 = arith.constant 0 : i32
    %c0_i32_1 = arith.constant 0 : i32
    return %arg0, %c0_i32, %c0_i32_0 : i32, i32, i32
  }
}

</mosaic_0001>

<llo_original>
// kernel: valid_mae_loss.1
$region0: #{valid_mae_loss.1}
  #allocation0 [shape = 'u32[]', space=smem, size = 0x4, offset = 0x4, fixed_abs, tag = 'smem constant byte address 0x4 - core index']
  #allocation1 [shape = 'u32[144,128]{1,0:T(1,128)}', space=vmem, size = 0x12000, scoped, tag = 'internal scratch']
  #allocation2 [shape = 'f32[16,16]{1,0:T(8,128)}', space=vmem, size = 0x2000, scoped, tag = 'scratch operand']
  #allocation3 [shape = 'f32[16,16]{1,0:T(8,128)}', space=vmem, size = 0x2000, scoped, tag = 'scratch operand']
  %s0 = inlined_call_operand.vmem [shape: f32[2], index: 0, kind: input, shape index: {}]
  %s1 = inlined_call_operand.vmem [shape: f32[2], index: 1, kind: input, shape index: {}]
  %s2 = inlined_call_operand.hbm [shape: f32[2,16,16], index: 2, kind: input, shape index: {}]
  %s3 = inlined_call_operand.hbm [shape: f32[2,16,16], index: 3, kind: input, shape index: {}]
  %s4 = inlined_call_operand.hbm [shape: f32[2,16,16], index: 4, kind: input, shape index: {}]
  %s5 = inlined_call_operand.vmem [shape: f32[2,1,1], index: 5, kind: output, shape index: {}]
  %s6 = sld [smem:[#allocation0]]
  $region81: #{valid_mae_loss.1} parent=0
    _
  %s8 = ssub.s32 1, %s6
  %s9 = scalar_select 0, %s8, %s6
  $region1: #{valid_mae_loss.1} parent=0
    #allocation4 [shape = 'u8[512]{0}', space=smem, size = 0x200, scoped, tag = 'input window, operand 0, single buffered']
    #allocation5 [shape = 's32[2]{0}', space=sflag, size = 0x8, scoped, tag = 'scoped memory for valid_mae_loss.1']
    #allocation6 [shape = 's32[2]{0}', space=sflag, size = 0x8, scoped, tag = 'scoped memory for valid_mae_loss.1']
    #allocation7 [shape = 'u8[512]{0}', space=smem, size = 0x200, scoped, tag = 'input window, operand 1, single buffered']
    #allocation8 [shape = 's32[1]{0}', space=sflag, size = 0x4, scoped, tag = 'scoped memory for valid_mae_loss.1']
    #allocation9 [shape = 'u8[16384]{0}', space=vmem, size = 0x4000, scoped, tag = 'input window, operand 2']
    #allocation10 [shape = 'u8[16384]{0}', space=vmem, size = 0x4000, scoped, tag = 'input window, operand 3']
    #allocation11 [shape = 's32[2]{0}', space=sflag, size = 0x8, scoped, tag = 'scoped memory for valid_mae_loss.1']
    #allocation12 [shape = 'u8[16384]{0}', space=vmem, size = 0x4000, scoped, tag = 'input window, operand 4']
    %10 = vsyncpa [#allocation6], 0
    %11 = vsyncpa [#allocation8], 0
    %12 = vsyncpa [#allocation5], 0
    %s13 = scalar_lea.sflag [#allocation5], 1
    %14 = vsyncpa %s13, 0
    %15 = vsyncpa [#allocation11], 0
    %s16 = scalar_lea.sflag [#allocation11], 1
    %17 = vsyncpa %s16, 0
    loop: start=0, step=1, limit=4
    $region2: #{valid_mae_loss.1} parent=1 // loop_pre_header
      _
    $region3: #{valid_mae_loss.1} parent=1 // loop_header
      %s19 = sphi 0, %s23
      %p20 = scmp.ge.s32.totalorder %s19, 4
      %s26 = sphi 0, %s38
      %s27 = sphi 0, %s34
      %s28 = sphi 0, %s26
      %s29 = sphi 0, %s27
      %s30 = sphi 0, %s28
      %s31 = sphi 0, %s29
      %s39 = sphi 0, %s39
      %s41 = sphi 0, %s39
      %s42 = sphi 0, %s41
      %s56 = sphi 0, %s42
      %s60 = sphi 0, %s60
      %s62 = sphi 0, %s60
      %s63 = sphi 0, %s62
      %s77 = sphi 0, %s63
      %s85 = sphi 0, %s87
      %s88 = sphi 0, %s85
      %s89 = sphi 0, %s88
      %s105 = sphi 0, %s89
      %s113 = sphi 0, %s115
      %s116 = sphi 0, %s113
      %s117 = sphi 0, %s116
      %s133 = sphi 0, %s117
      %s141 = sphi 0, %s143
      %s144 = sphi 0, %s141
      %s145 = sphi 0, %s144
      %s161 = sphi 0, %s145
      %s167 = sphi 0, %s169
      %s170 = sphi 0, %s167
      %s171 = sphi 0, %s170
      %s187 = sphi 0, %s171
    $region4: #{valid_mae_loss.1} parent=1 // loop_header_branch
      %22 = sbr.rel (%p20) target = $region8
    $region5: #{valid_mae_loss.1} parent=1 // loop_body
      %s24 = ssub.s32 %s19, 1
      %s25 = ssub.s32 %s19, 2
      %s32 = sadd.s32 1, %s27
      %p33 = scmp.ge.s32.totalorder %s32, 1
      %s34 = scalar_select %p33, 0, %s32
      %s35 = sadd.s32 1, %s26
      %s36 = scalar_select %p33, %s35, %s26
      %p37 = scmp.ge.s32.totalorder %s36, 2
      %s38 = scalar_select %p37, 0, %s36
      %s40 = sadd.s32 %s39, 1
      %p43 = scmp.eq.s32.totalorder %s19, 1
      %p44 = scmp.ne.s32.totalorder %s39, %s41
      %p45 = scmp.eq.s32.totalorder %s19, 0
      %p46 = por %p44, %p45
      %p47 = scmp.ne.s32.totalorder %s39, %s41
      %p48 = scmp.eq.s32.totalorder %s24, 1
      %p49 = por %p47, %p48
      %p50 = scmp.ne.s32.totalorder %s41, %s42
      %p51 = scmp.eq.s32.totalorder %s24, 0
      %p52 = por %p50, %p51
      %p53 = scmp.ne.s32.totalorder %s41, %s42
      %p54 = scmp.eq.s32.totalorder %s25, 1
      %p55 = por %p53, %p54
      %p57 = scmp.ne.s32.totalorder %s42, %s56
      %p58 = scmp.eq.s32.totalorder %s25, 0
      %p59 = por %p57, %p58
      %s61 = sadd.s32 %s60, 1
      %p64 = scmp.eq.s32.totalorder %s19, 1
      %p65 = scmp.ne.s32.totalorder %s60, %s62
      %p66 = scmp.eq.s32.totalorder %s19, 0
      %p67 = por %p65, %p66
      %p68 = scmp.ne.s32.totalorder %s60, %s62
      %p69 = scmp.eq.s32.totalorder %s24, 1
      %p70 = por %p68, %p69
      %p71 = scmp.ne.s32.totalorder %s62, %s63
      %p72 = scmp.eq.s32.totalorder %s24, 0
      %p73 = por %p71, %p72
      %p74 = scmp.ne.s32.totalorder %s62, %s63
      %p75 = scmp.eq.s32.totalorder %s25, 1
      %p76 = por %p74, %p75
      %p78 = scmp.ne.s32.totalorder %s63, %s77
      %p79 = scmp.eq.s32.totalorder %s25, 0
      %p80 = por %p78, %p79
      %s81 = ssub.s32 %s26, %s38
      %s82 = ssub.s32 %s27, %s34
      %s83 = sor.u32 %s81, %s82
      %p84 = scmp.eq.s32.totalorder %s83, 0
      %s86 = sadd.s32 %s85, 1
      %s87 = scalar_select %p84, %s85, %s86
      %p90 = pneg %p84
      %p91 = scmp.eq.s32.totalorder %s19, 1
      %p92 = por %p90, %p91
      %p93 = scmp.ne.s32.totalorder %s85, %s88
      %p94 = scmp.eq.s32.totalorder %s19, 0
      %p95 = por %p93, %p94
      %p96 = scmp.ne.s32.totalorder %s85, %s88
      %p97 = scmp.eq.s32.totalorder %s24, 1
      %p98 = por %p96, %p97
      %p99 = scmp.ne.s32.totalorder %s88, %s89
      %p100 = scmp.eq.s32.totalorder %s24, 0
      %p101 = por %p99, %p100
      %p102 = scmp.ne.s32.totalorder %s88, %s89
      %p103 = scmp.eq.s32.totalorder %s25, 1
      %p104 = por %p102, %p103
      %p106 = scmp.ne.s32.totalorder %s89, %s105
      %p107 = scmp.eq.s32.totalorder %s25, 0
      %p108 = por %p106, %p107
      %s109 = ssub.s32 %s26, %s38
      %s110 = ssub.s32 %s27, %s34
      %s111 = sor.u32 %s109, %s110
      %p112 = scmp.eq.s32.totalorder %s111, 0
      %s114 = sadd.s32 %s113, 1
      %s115 = scalar_select %p112, %s113, %s114
      %p118 = pneg %p112
      %p119 = scmp.eq.s32.totalorder %s19, 1
      %p120 = por %p118, %p119
      %p121 = scmp.ne.s32.totalorder %s113, %s116
      %p122 = scmp.eq.s32.totalorder %s19, 0
      %p123 = por %p121, %p122
      %p124 = scmp.ne.s32.totalorder %s113, %s116
      %p125 = scmp.eq.s32.totalorder %s24, 1
      %p126 = por %p124, %p125
      %p127 = scmp.ne.s32.totalorder %s116, %s117
      %p128 = scmp.eq.s32.totalorder %s24, 0
      %p129 = por %p127, %p128
      %p130 = scmp.ne.s32.totalorder %s116, %s117
      %p131 = scmp.eq.s32.totalorder %s25, 1
      %p132 = por %p130, %p131
      %p134 = scmp.ne.s32.totalorder %s117, %s133
      %p135 = scmp.eq.s32.totalorder %s25, 0
      %p136 = por %p134, %p135
      %s137 = ssub.s32 %s26, %s38
      %s138 = ssub.s32 %s27, %s34
      %s139 = sor.u32 %s137, %s138
      %p140 = scmp.eq.s32.totalorder %s139, 0
      %s142 = sadd.s32 %s141, 1
      %s143 = scalar_select %p140, %s141, %s142
      %p146 = pneg %p140
      %p147 = scmp.eq.s32.totalorder %s19, 1
      %p148 = por %p146, %p147
      %p149 = scmp.ne.s32.totalorder %s141, %s144
      %p150 = scmp.eq.s32.totalorder %s19, 0
      %p151 = por %p149, %p150
      %p152 = scmp.ne.s32.totalorder %s141, %s144
      %p153 = scmp.eq.s32.totalorder %s24, 1
      %p154 = por %p152, %p153
      %p155 = scmp.ne.s32.totalorder %s144, %s145
      %p156 = scmp.eq.s32.totalorder %s24, 0
      %p157 = por %p155, %p156
      %p158 = scmp.ne.s32.totalorder %s144, %s145
      %p159 = scmp.eq.s32.totalorder %s25, 1
      %p160 = por %p158, %p159
      %p162 = scmp.ne.s32.totalorder %s145, %s161
      %p163 = scmp.eq.s32.totalorder %s25, 0
      %p164 = por %p162, %p163
      %s165 = ssub.s32 %s26, %s38
      %p166 = scmp.eq.s32.totalorder %s165, 0
      %s168 = sadd.s32 %s167, 1
      %s169 = scalar_select %p166, %s167, %s168
      %p172 = pneg %p166
      %p173 = scmp.eq.s32.totalorder %s19, 1
      %p174 = por %p172, %p173
      %p175 = scmp.ne.s32.totalorder %s167, %s170
      %p176 = scmp.eq.s32.totalorder %s19, 0
      %p177 = por %p175, %p176
      %p178 = scmp.ne.s32.totalorder %s167, %s170
      %p179 = scmp.eq.s32.totalorder %s24, 1
      %p180 = por %p178, %p179
      %p181 = scmp.ne.s32.totalorder %s170, %s171
      %p182 = scmp.eq.s32.totalorder %s24, 0
      %p183 = por %p181, %p182
      %p184 = scmp.ne.s32.totalorder %s170, %s171
      %p185 = scmp.eq.s32.totalorder %s25, 1
      %p186 = por %p184, %p185
      %p188 = scmp.ne.s32.totalorder %s171, %s187
      %p189 = scmp.eq.s32.totalorder %s25, 0
      %p190 = por %p188, %p189
      %p191 = scmp.le.s32.totalorder 1, %s19
      %p192 = scmp.lt.s32.totalorder %s19, 3
      %p193 = pnand %p191, %p192
      %p194 = pneg %p193
      // Predicated region
      $region9: #{valid_mae_loss.1} parent=5 // pred_check
        _
      $region10: #{valid_mae_loss.1} parent=5 // pred_check_branch
        %196 = sbr.rel (%p193) target = $region12
      $region11: #{valid_mae_loss.1} parent=5 // pred_region
        %s197 = ssub.s32 %s19, 1
        // Predicated region
        $region13: #{valid_mae_loss.1} parent=11 // pred_check
          %p198 = pneg %p52
        $region14: #{valid_mae_loss.1} parent=11 // pred_check_branch
          %200 = sbr.rel (%p198) target = $region16
        $region15: #{valid_mae_loss.1} parent=11 // pred_region
          %s202 = ssub.s32 16, 16
          %203 = vsyncadd [#allocation6], %s202
          %s205 = sshll.u32 %s0, 4
          %s206 = int_to_ptr.vmem [resolvable:$true] %s205
          %208 = dma.vmem_to_smem %s206, 16, [#allocation4], [#allocation6]
        $region16: #{valid_mae_loss.1} parent=11 // pred_fallthru
          _
        // Predicated region
        $region17: #{valid_mae_loss.1} parent=11 // pred_check
          %p209 = pneg %p73
        $region18: #{valid_mae_loss.1} parent=11 // pred_check_branch
          %211 = sbr.rel (%p209) target = $region20
        $region19: #{valid_mae_loss.1} parent=11 // pred_region
          %s213 = ssub.s32 16, 16
          %214 = vsyncadd [#allocation8], %s213
          %s216 = sshll.u32 %s1, 4
          %s217 = int_to_ptr.vmem [resolvable:$true] %s216
          %219 = dma.vmem_to_smem %s217, 16, [#allocation7], [#allocation8]
        $region20: #{valid_mae_loss.1} parent=11 // pred_fallthru
          _
      $region12: #{valid_mae_loss.1} parent=5 // pred_fallthru
        _
      %p220 = scmp.lt.s32.totalorder %s19, 2
      // Predicated region
      $region21: #{valid_mae_loss.1} parent=5 // pred_check
        %p221 = pneg %p220
      $region22: #{valid_mae_loss.1} parent=5 // pred_check_branch
        %223 = sbr.rel (%p221) target = $region24
      $region23: #{valid_mae_loss.1} parent=5 // pred_region
        // Predicated region
        $region25: #{valid_mae_loss.1} parent=23 // pred_check
          %p224 = pneg %p95
        $region26: #{valid_mae_loss.1} parent=23 // pred_check_branch
          %226 = sbr.rel (%p224) target = $region28
        $region27: #{valid_mae_loss.1} parent=23 // pred_region
          %s227 = sand.u32 %s85, 1
          %s228 = scalar_lea.sflag [#allocation5], %s227
          %s229 = sand.u32 %s85, 1
          %s230 = smul.addr %s229, 16
          %s231 = scalar_lea.vmem [#allocation9], %s230
          %s232 = smul.u32 2, %s27
          %s234 = ssub.s32 256, 256
          %235 = vsyncadd %s228, %s234
          %s236 = smul.addr %s26, 2
          %s237 = sadd.s32 %s232, %s236
          %s238 = smul.addr %s237, 128
          %s239 = scalar_lea.hbm %s2, %s238
          %s240 = sshll.u32 %s231, 4
          %s241 = int_to_ptr.vmem [resolvable:$true] %s240
          %246 = dma.hbm_to_vmem [thread:$0]  %s239, 256, %s241, %s228, 128, 128, 8
        $region28: #{valid_mae_loss.1} parent=23 // pred_fallthru
          _
        // Predicated region
        $region29: #{valid_mae_loss.1} parent=23 // pred_check
          %p247 = pneg %p123
        $region30: #{valid_mae_loss.1} parent=23 // pred_check_branch
          %249 = sbr.rel (%p247) target = $region32
        $region31: #{valid_mae_loss.1} parent=23 // pred_region
          %s250 = sand.u32 %s19, 1
          %s251 = scalar_lea.sflag [#allocation11], %s250
          %s252 = sand.u32 %s113, 1
          %s253 = smul.addr %s252, 16
          %s254 = scalar_lea.vmem [#allocation10], %s253
          %s255 = smul.u32 2, %s27
          %s257 = ssub.s32 256, 256
          %258 = vsyncadd %s251, %s257
          %s259 = smul.addr %s26, 2
          %s260 = sadd.s32 %s255, %s259
          %s261 = smul.addr %s260, 128
          %s262 = scalar_lea.hbm %s3, %s261
          %s263 = sshll.u32 %s254, 4
          %s264 = int_to_ptr.vmem [resolvable:$true] %s263
          %269 = dma.hbm_to_vmem [thread:$0]  %s262, 256, %s264, %s251, 128, 128, 8
        $region32: #{valid_mae_loss.1} parent=23 // pred_fallthru
          _
        // Predicated region
        $region33: #{valid_mae_loss.1} parent=23 // pred_check
          %p270 = pneg %p151
        $region34: #{valid_mae_loss.1} parent=23 // pred_check_branch
          %272 = sbr.rel (%p270) target = $region36
        $region35: #{valid_mae_loss.1} parent=23 // pred_region
          %s273 = sand.u32 %s19, 1
          %s274 = scalar_lea.sflag [#allocation11], %s273
          %s275 = sand.u32 %s141, 1
          %s276 = smul.addr %s275, 16
          %s277 = scalar_lea.vmem [#allocation12], %s276
          %s278 = smul.u32 2, %s27
          %s280 = ssub.s32 256, 256
          %281 = vsyncadd %s274, %s280
          %s282 = smul.addr %s26, 2
          %s283 = sadd.s32 %s278, %s282
          %s284 = smul.addr %s283, 128
          %s285 = scalar_lea.hbm %s4, %s284
          %s286 = sshll.u32 %s277, 4
          %s287 = int_to_ptr.vmem [resolvable:$true] %s286
          %292 = dma.hbm_to_vmem [thread:$0]  %s285, 256, %s287, %s274, 128, 128, 8
        $region36: #{valid_mae_loss.1} parent=23 // pred_fallthru
          _
      $region24: #{valid_mae_loss.1} parent=5 // pred_fallthru
        _
      %p293 = scmp.le.s32.totalorder 1, %s19
      %p294 = scmp.lt.s32.totalorder %s19, 3
      %p295 = pnand %p293, %p294
      %p296 = pneg %p295
      // Predicated region
      $region37: #{valid_mae_loss.1} parent=5 // pred_check
        _
      $region38: #{valid_mae_loss.1} parent=5 // pred_check_branch
        %298 = sbr.rel (%p295) target = $region40
      $region39: #{valid_mae_loss.1} parent=5 // pred_region
        %s299 = ssub.s32 %s19, 1
        // Predicated region
        $region41: #{valid_mae_loss.1} parent=39 // pred_check
          %p300 = pneg %p52
        $region42: #{valid_mae_loss.1} parent=39 // pred_check_branch
          %302 = sbr.rel (%p300) target = $region44
        $region43: #{valid_mae_loss.1} parent=39 // pred_region
          %303 = dma.done [#allocation6], 16
        $region44: #{valid_mae_loss.1} parent=39 // pred_fallthru
          _
        // Predicated region
        $region45: #{valid_mae_loss.1} parent=39 // pred_check
          %p304 = pneg %p73
        $region46: #{valid_mae_loss.1} parent=39 // pred_check_branch
          %306 = sbr.rel (%p304) target = $region48
        $region47: #{valid_mae_loss.1} parent=39 // pred_region
          %307 = dma.done [#allocation8], 16
        $region48: #{valid_mae_loss.1} parent=39 // pred_fallthru
          _
        %s308 = sand.u32 %s88, 1
        %s309 = scalar_lea.sflag [#allocation5], %s308
        %s310 = sand.u32 %s88, 1
        %s311 = smul.addr %s310, 16
        %s312 = scalar_lea.vmem [#allocation9], %s311
        // Predicated region
        $region49: #{valid_mae_loss.1} parent=39 // pred_check
          %p313 = pneg %p101
        $region50: #{valid_mae_loss.1} parent=39 // pred_check_branch
          %315 = sbr.rel (%p313) target = $region52
        $region51: #{valid_mae_loss.1} parent=39 // pred_region
          %316 = dma.done %s309, 256
        $region52: #{valid_mae_loss.1} parent=39 // pred_fallthru
          _
        %s317 = sand.u32 %s24, 1
        %s318 = scalar_lea.sflag [#allocation11], %s317
        %s319 = sand.u32 %s116, 1
        %s320 = smul.addr %s319, 16
        %s321 = scalar_lea.vmem [#allocation10], %s320
        // Predicated region
        $region53: #{valid_mae_loss.1} parent=39 // pred_check
          %p322 = pneg %p129
        $region54: #{valid_mae_loss.1} parent=39 // pred_check_branch
          %324 = sbr.rel (%p322) target = $region56
        $region55: #{valid_mae_loss.1} parent=39 // pred_region
          %325 = dma.done %s318, 256
        $region56: #{valid_mae_loss.1} parent=39 // pred_fallthru
          _
        %s326 = sand.u32 %s24, 1
        %s327 = scalar_lea.sflag [#allocation11], %s326
        %s328 = sand.u32 %s144, 1
        %s329 = smul.addr %s328, 16
        %s330 = scalar_lea.vmem [#allocation12], %s329
        // Predicated region
        $region57: #{valid_mae_loss.1} parent=39 // pred_check
          %p331 = pneg %p157
        $region58: #{valid_mae_loss.1} parent=39 // pred_check_branch
          %333 = sbr.rel (%p331) target = $region60
        $region59: #{valid_mae_loss.1} parent=39 // pred_region
          %334 = dma.done %s327, 256
        $region60: #{valid_mae_loss.1} parent=39 // pred_fallthru
          _
        %335 = sfence
        %p336 = pneg %p52
        %p337 = pneg %p49
        %p338 = pneg %p73
        %p339 = pneg %p70
        %s340 = sand.u32 %s88, 1
        %s341 = scalar_lea.sflag [#allocation5], %s340
        %s342 = sand.u32 %s88, 1
        %s343 = smul.addr %s342, 16
        %s344 = scalar_lea.vmem [#allocation9], %s343
        %p345 = pneg %p101
        %p346 = pneg %p98
        %s347 = sand.u32 %s24, 1
        %s348 = scalar_lea.sflag [#allocation11], %s347
        %s349 = sand.u32 %s116, 1
        %s350 = smul.addr %s349, 16
        %s351 = scalar_lea.vmem [#allocation10], %s350
        %p352 = pneg %p129
        %p353 = pneg %p126
        %s354 = sand.u32 %s24, 1
        %s355 = scalar_lea.sflag [#allocation11], %s354
        %s356 = sand.u32 %s144, 1
        %s357 = smul.addr %s356, 16
        %s358 = scalar_lea.vmem [#allocation12], %s357
        %p359 = pneg %p157
        %p360 = pneg %p154
        %p361 = pneg %p183
        %p362 = pneg %p180
        %p363 = scmp.lt.s32.totalorder %s28, 1
        %s364 = scalar_select %p363, %s28, 1
        %s365 = scalar_lea.vmem %s5, %s364
        %s366 = smul.u32 2, %s29
        %s367 = smul.u32 2, %s29
        %s368 = smul.u32 2, %s29
        %p369 = scmp.lt.s32.totalorder %s28, 1
        %s370 = scalar_select %p369, %s28, 1
        %s371 = scalar_lea.vmem %s5, %s370
        %p372 = scmp.eq.s32.totalorder %s29, 0
        // Predicated region
        $region61: #{valid_mae_loss.1} parent=39 // pred_check
          %p373 = pneg %p372
        $region62: #{valid_mae_loss.1} parent=39 // pred_check_branch
          %375 = sbr.rel (%p373) target = $region64
        $region63: #{valid_mae_loss.1} parent=39 // pred_region
          %vm376 = vcmask 130048
          %377 = vst.msk [vmem:[#allocation2] sm:$0xff] %vm376, 0.0
          %378 = vst.msk [vmem:[#allocation2 + $0x8] sm:$0xff] %vm376, 0.0
          %379 = vst.msk [vmem:[#allocation3] sm:$0xff] %vm376, 0.0
          %380 = vst.msk [vmem:[#allocation3 + $0x8] sm:$0xff] %vm376, 0.0
        $region64: #{valid_mae_loss.1} parent=39 // pred_fallthru
          _
        %v381 = vld [vmem:[%s321] sm:$0xff]
        %v382 = vld [vmem:[%s321 + $0x8] sm:$0xff]
        %v383 = vld [vmem:[%s330] sm:$0xff]
        %v384 = vld [vmem:[%s330 + $0x8] sm:$0xff]
        %v385 = vld [vmem:[%s312] sm:$0xff]
        %v386 = vld [vmem:[%s312 + $0x8] sm:$0xff]
        %s387 = sld [smem:[#allocation4 + %s28]]
        %vm388 = vcmp.ne.f32.partialorder %v381, 0.0
        %vm389 = vcmp.ne.f32.partialorder %v382, 0.0
        %v390 = vsub.f32 %v381, %v383
        %v391 = vsub.f32 %v382, %v384
        %v392 = vand.u32 2147483647, %v390
        %v393 = vand.u32 2147483647, %v391
        %v394 = vstv %s387
        %vm395 = vcmp.lt.f32.partialorder %v392, %v394
        %vm396 = vcmp.lt.f32.partialorder %v393, %v394
        %vm397 = vmand %vm388, %vm395
        %vm398 = vmand %vm389, %vm396
        %v399 = vsub.f32 %v385, %v381
        %v400 = vsub.f32 %v386, %v382
        %v401 = vand.u32 2147483647, %v399
        %v402 = vand.u32 2147483647, %v400
        %v403 = vld [vmem:[#allocation2] sm:$0xff]
        %v404 = vld [vmem:[#allocation2 + $0x8] sm:$0xff]
        %v405 = vsel %vm397, 1, 0
        %v406 = vsel %vm398, 1, 0
        %v407 = vcvt.s32.f32 %v405
        %v408 = vcvt.s32.f32 %v406
        %v409 = vadd.f32 %v403, %v407
        %v410 = vadd.f32 %v404, %v408
        %vm411 = vcmask 130048
        %412 = vst.msk [vmem:[#allocation2] sm:$0xff] %vm411, %v409
        %413 = vst.msk [vmem:[#allocation2 + $0x8] sm:$0xff] %vm411, %v410
        %v414 = vld [vmem:[#allocation3] sm:$0xff]
        %v415 = vld [vmem:[#allocation3 + $0x8] sm:$0xff]
        %v416 = vsel %vm397, %v401, 0.0
        %v417 = vsel %vm398, %v402, 0.0
        %v418 = vadd.f32 %v414, %v416
        %v419 = vadd.f32 %v415, %v417
        %420 = vst.msk [vmem:[#allocation3] sm:$0xff] %vm411, %v418
        %421 = vst.msk [vmem:[#allocation3 + $0x8] sm:$0xff] %vm411, %v419
        // Predicated region
        $region65: #{valid_mae_loss.1} parent=39 // pred_check
          %p422 = pneg %p372
        $region66: #{valid_mae_loss.1} parent=39 // pred_check_branch
          %424 = sbr.rel (%p422) target = $region68
        $region67: #{valid_mae_loss.1} parent=39 // pred_region
          %v425 = vld [vmem:[#allocation2] sm:$0xff]
          %v426 = vld [vmem:[#allocation2 + $0x8] sm:$0xff]
          %v427 = vsel %vm411, %v425, 0.0
          %v428 = vsel %vm411, %v426, 0.0
          %v429 = vadd.f32 %v427, %v428
          %430 = vadd.xlane.f32.xlu0 %v429
          %v431 = vpop.xlane.xlu0 %430
          %v432 = vrot.slane %v431, 4
          %v433 = vadd.f32 %v431, %v432
          %v434 = vrot.slane %v433, 2
          %v435 = vadd.f32 %v433, %v434
          %v436 = vrot.slane %v435, 1
          %v437 = vadd.f32 %v435, %v436
          %s438 = vtos %v437
          %s439 = sadd.f32 %s438, 1e-07
          %v440 = vld [vmem:[#allocation3] sm:$0xff]
          %v441 = vld [vmem:[#allocation3 + $0x8] sm:$0xff]
          %v442 = vsel %vm411, %v440, 0.0
          %v443 = vsel %vm411, %v441, 0.0
          %v444 = vadd.f32 %v442, %v443
          %445 = vadd.xlane.f32.xlu0 %v444
          %v446 = vpop.xlane.xlu0 %445
          %v447 = vrot.slane %v446, 4
          %v448 = vadd.f32 %v446, %v447
          %v449 = vrot.slane %v448, 2
          %v450 = vadd.f32 %v448, %v449
          %v451 = vrot.slane %v450, 1
          %v452 = vadd.f32 %v450, %v451
          %s453 = vtos %v452
          %s454 = sld [smem:[#allocation7 + %s28]]
          %s455 = smul.f32 %s454, %s439
          %v456 = vstv %s455
          %v457 = vrcp.pop %v456
          %s458 = vtos %v457
          %s459 = smul.f32 %s453, %s458
          %v460 = vstv %s459
          %vm461 = vcmask 0
          %462 = vst.msk [vmem:[%s371] sm:$0x1] %vm461, %v460
        $region68: #{valid_mae_loss.1} parent=39 // pred_fallthru
          _
        %p463 = scmp.lt.s32.totalorder %s28, 1
        %s464 = scalar_select %p463, %s28, 1
        %s465 = scalar_lea.vmem %s5, %s464
        // Predicated region
        $region69: #{valid_mae_loss.1} parent=39 // pred_check
          %p466 = pneg %p180
        $region70: #{valid_mae_loss.1} parent=39 // pred_check_branch
          %468 = sbr.rel (%p466) target = $region72
        $region71: #{valid_mae_loss.1} parent=39 // pred_region
          _
        $region72: #{valid_mae_loss.1} parent=39 // pred_fallthru
          _
      $region40: #{valid_mae_loss.1} parent=5 // pred_fallthru
        _
      %p469 = scmp.le.s32.totalorder 2, %s19
      // Predicated region
      $region73: #{valid_mae_loss.1} parent=5 // pred_check
        %p470 = pneg %p469
      $region74: #{valid_mae_loss.1} parent=5 // pred_check_branch
        %472 = sbr.rel (%p470) target = $region76
      $region75: #{valid_mae_loss.1} parent=5 // pred_region
        %s473 = ssub.s32 %s19, 2
        // Predicated region
        $region77: #{valid_mae_loss.1} parent=75 // pred_check
          %p474 = pneg %p186
        $region78: #{valid_mae_loss.1} parent=75 // pred_check_branch
          %476 = sbr.rel (%p474) target = $region80
        $region79: #{valid_mae_loss.1} parent=75 // pred_region
          %p477 = scmp.lt.s32.totalorder %s30, 1
          %s478 = scalar_select %p477, %s30, 1
          %s479 = scalar_lea.vmem %s5, %s478
        $region80: #{valid_mae_loss.1} parent=75 // pred_fallthru
          _
      $region76: #{valid_mae_loss.1} parent=5 // pred_fallthru
        _
    $region6: #{valid_mae_loss.1} parent=1 // loop_footer
      %s23 = sadd.s32 1, %s19
    $region7: #{valid_mae_loss.1} parent=1 // loop_footer_branch
      %18 = sbr.rel target = $region3
    $region8: #{valid_mae_loss.1} parent=1 // loop_exit
      _
    %480 = vsyncpa [#allocation5], 1
    %s481 = scalar_lea.sflag [#allocation5], 1
    %482 = vsyncpa %s481, 1
    %483 = vsyncpa [#allocation11], 1
    %s484 = scalar_lea.sflag [#allocation11], 1
    %485 = vsyncpa %s484, 1
    %486 = vsyncpa [#allocation6], 1
    %s487 = scalar_lea.sflag [#allocation6], 1
    %488 = vsyncpa %s487, 1
    %489 = vsyncpa [#allocation8], 1

</llo_original>
